<compile_context>
chip_gen: v5e
topology: v5e:2x2
jax: 0.10.0
libtpu: 0.0.40
codegen_flags: <defaults>
</compile_context>

<pallas_src>
import jax
import jax.numpy as jnp
from jax.experimental import pallas as pl
from jax.experimental.pallas import tpu as pltpu

INPUT_DIM = 256
HIDDEN_DIM = 512
NUM_CLASSES = 30
LANE = 128                      # lane-dense padded output width
MAX_TILE_B = 1024               # batch rows per grid step (multiple of 8)


def _round_up(x, m):
    return ((x + m - 1) // m) * m


def _batch_tiling(B):
    """Pick (b_pad, tile_b) with tile_b | b_pad, bounded padding waste and a
    bounded set of distinct shapes (-> bounded Mosaic recompiles)."""
    b8 = _round_up(max(B, 1), 8)
    if b8 <= 256:
        b_pad = max(8, pl.next_power_of_2(b8))          # 8,16,32,64,128,256
        return b_pad, b_pad                              # single grid step
    b_pad = _round_up(b8, 256)                           # <=255 padded rows
    tile_b = min(MAX_TILE_B, b_pad)
    while b_pad % tile_b:                                # 256 always divides
        tile_b -= 8
    return b_pad, tile_b


def _mlp_kernel(x_ref, w1_ref, b1_ref, w2_ref, b2_ref, o_ref):
    # Layer 1: Linear(256 -> 512) + ReLU.
    # bf16 MXU inputs (no-op cast if x already bf16), f32 accumulation;
    # bias add + ReLU stay in f32 (VPU-friendly on v5e).
    x_bf = x_ref[...].astype(jnp.bfloat16)
    h = jnp.dot(x_bf, w1_ref[...], preferred_element_type=jnp.float32)
    h = jnp.maximum(h + b1_ref[...], 0.0)

    # Dropout(0.3): identity in eval mode.
    # TODO(synk): training-mode dropout would use pltpu.prng_seed + prng_random_bits.

    # Layer 2: Linear(512 -> 128 padded), lane-dense output tile.
    out = jnp.dot(h.astype(jnp.bfloat16), w2_ref[...],
                  preferred_element_type=jnp.float32)
    o_ref[...] = (out + b2_ref[...]).astype(o_ref.dtype)


def prepare_params(w1, b1, w2, b2):
    """One-time parameter conversion (call at model setup, reuse every step).

    w1: [256, 512]; b1: [512] or [1, 512]; w2: [512, 30]; b2: [30] or [1, 30].
    Returns (w1_bf16, b1_f32[1,512], w2_bf16_padded[512,128], b2_f32_padded[1,128]).
    """
    n_pad = _round_up(NUM_CLASSES, LANE)                 # 128
    w1_bf = w1.astype(jnp.bfloat16)
    b1_f = jnp.reshape(b1, (1, HIDDEN_DIM)).astype(jnp.float32)
    w2_bf = jnp.pad(w2, ((0, 0), (0, n_pad - NUM_CLASSES))).astype(jnp.bfloat16)
    b2_f = jnp.pad(jnp.reshape(b2, (1, NUM_CLASSES)),
                   ((0, 0), (0, n_pad - NUM_CLASSES))).astype(jnp.float32)
    return w1_bf, b1_f, w2_bf, b2_f


def extended_classifier_prepared(x, params, *, out_dtype=jnp.float32,
                                 return_padded=False):
    """Forward pass with pre-converted params (fast path for serving).

    x: [B, 256] in f32 or bf16 (pass bf16 from the upstream producer to halve
    the dominant HBM stream).  Returns [B, 30] (or the padded [b_pad, 128]
    lane-dense buffer if return_padded=True so the slice can fuse downstream).
    """
    w1_bf, b1_f, w2_bf, b2_f = params
    B, d_in = x.shape
    assert d_in == INPUT_DIM
    n_pad = w2_bf.shape[1]                               # 128

    b_pad, tile_b = _batch_tiling(B)
    if b_pad != B:
        x = jnp.pad(x, ((0, b_pad - B), (0, 0)))
    grid = (b_pad // tile_b,)

    xbytes = x.dtype.itemsize
    obytes = jnp.dtype(out_dtype).itemsize

    out_padded = pl.pallas_call(
        _mlp_kernel,
        out_shape=jax.ShapeDtypeStruct((b_pad, n_pad), out_dtype),
        grid_spec=pltpu.PrefetchScalarGridSpec(
            num_scalar_prefetch=0,
            grid=grid,
            in_specs=[
                # batch tile marches along the grid (double-buffered DMA)
                pl.BlockSpec((tile_b, INPUT_DIM), lambda i: (i, 0)),
                # weights/biases: constant block index -> VMEM-resident
                pl.BlockSpec((INPUT_DIM, HIDDEN_DIM), lambda i: (0, 0)),
                pl.BlockSpec((1, HIDDEN_DIM), lambda i: (0, 0)),
                pl.BlockSpec((HIDDEN_DIM, n_pad), lambda i: (0, 0)),
                pl.BlockSpec((1, n_pad), lambda i: (0, 0)),
            ],
            out_specs=pl.BlockSpec((tile_b, n_pad), lambda i: (i, 0)),
        ),
        compiler_params=pltpu.CompilerParams(
            # On v7x with grid > 1 step, (pltpu.CORE_PARALLEL,) engages both
            # TensorCores; "parallel" is kept for portability to v5e/v6e.
            dimension_semantics=("parallel",),
        ),
        cost_estimate=pl.CostEstimate(
            flops=2 * b_pad * (INPUT_DIM * HIDDEN_DIM + HIDDEN_DIM * n_pad),
            transcendentals=0,
            bytes_accessed=(b_pad * INPUT_DIM * xbytes       # x
                            + b_pad * n_pad * obytes         # out
                            + INPUT_DIM * HIDDEN_DIM * 2     # w1 (bf16)
                            + HIDDEN_DIM * n_pad * 2         # w2 (bf16)
                            + HIDDEN_DIM * 4 + n_pad * 4),   # biases
        ),
    )(x, w1_bf, b1_f, w2_bf, b2_f)

    if return_padded:
        return out_padded                                  # [b_pad, 128]
    return out_padded[:B, :NUM_CLASSES]                   # fuse under caller's jit


def extended_classifier(x, w1, b1, w2, b2, **kwargs):
    """Drop-in convenience wrapper. For serving, call prepare_params() once
    and use extended_classifier_prepared() to avoid per-call weight casts."""
    return extended_classifier_prepared(x, prepare_params(w1, b1, w2, b2), **kwargs)


def _init_linear(key, fan_in, fan_out):
    # PyTorch nn.Linear default init: U(-1/sqrt(fan_in), 1/sqrt(fan_in))
    kw, kb = jax.random.split(key)
    bound = 1.0 / jnp.sqrt(jnp.float32(fan_in))
    w = jax.random.uniform(kw, (fan_in, fan_out), jnp.float32, -bound, bound)
    b = jax.random.uniform(kb, (1, fan_out), jnp.float32, -bound, bound)
    return w, b


def _reference_bf16(x, w1, b1, w2, b2):
    # Matches the kernel math: bf16 matmul inputs, f32 accumulation, f32 bias/ReLU.
    h = jnp.dot(x.astype(jnp.bfloat16), w1.astype(jnp.bfloat16),
                preferred_element_type=jnp.float32) + b1
    h = jnp.maximum(h, 0.0)
    return jnp.dot(h.astype(jnp.bfloat16), w2.astype(jnp.bfloat16),
                   preferred_element_type=jnp.float32) + b2


if __name__ == "__main__":
    key = jax.random.PRNGKey(0)
    kx, k1, k2, kx2 = jax.random.split(key, 4)

    w1, b1 = _init_linear(k1, INPUT_DIM, HIDDEN_DIM)
    w2, b2 = _init_linear(k2, HIDDEN_DIM, NUM_CLASSES)

    # One-time parameter preparation (hoisted out of the per-call path).
    params = jax.block_until_ready(prepare_params(w1, b1, w2, b2))

    fwd = jax.jit(extended_classifier_prepared)

    # Small primary example: B=8 (single 8-row grid step).
    B = 8
    x = jax.random.normal(kx, (B, INPUT_DIM), jnp.float32)
    out = jax.block_until_ready(fwd(x, params))
    assert out.shape == (B, NUM_CLASSES)
    ref = _reference_bf16(x, w1, b1, w2, b2)
    assert jnp.allclose(out, ref, atol=2e-2, rtol=2e-2), \
        float(jnp.max(jnp.abs(out - ref)))

    # Larger batch exercising bucketing + multi-step grid (b_pad=1536, tile=768).
    B2 = 1300
    x2 = jax.random.normal(kx2, (B2, INPUT_DIM), jnp.float32)
    out2 = jax.block_until_ready(fwd(x2, params))
    assert out2.shape == (B2, NUM_CLASSES)
    ref2 = _reference_bf16(x2, w1, b1, w2, b2)
    assert jnp.allclose(out2, ref2, atol=2e-2, rtol=2e-2)

    # Informational only (bf16 MXU inputs vs full-f32 math): no assert to
    # avoid seed-dependent flakiness flagged in review.
    ref_f32 = jnp.maximum(x @ w1 + b1, 0.0) @ w2 + b2
    _max_dev_vs_f32 = float(jnp.max(jnp.abs(out - ref_f32)))

    print("KERNEL_OK")
</pallas_src>

<mosaic_0001>
module attributes {stable_mosaic.version = 11 : i64} {
  func.func @_mlp_kernel(%arg0: i32, %arg1: memref<8x256xf32, #tpu.memory_space<vmem>>, %arg2: memref<256x512xbf16, #tpu.memory_space<vmem>>, %arg3: memref<1x512xf32, #tpu.memory_space<vmem>>, %arg4: memref<512x128xbf16, #tpu.memory_space<vmem>>, %arg5: memref<1x128xf32, #tpu.memory_space<vmem>>, %arg6: memref<8x128xf32, #tpu.memory_space<vmem>>) attributes {dimension_semantics = [#tpu.dimension_semantics<parallel>], iteration_bounds = array<i64: 1>, scalar_prefetch = 0 : i64, scratch_operands = 0 : i64, tpu.core_type = #tpu.core_type<tc>, window_params = [{transform_indices = @transform_0, window_bounds = array<i64: 8, 256>}, {pipeline_mode = #tpu.pipeline_mode<synchronous>, transform_indices = @transform_1, window_bounds = array<i64: 256, 512>}, {pipeline_mode = #tpu.pipeline_mode<synchronous>, transform_indices = @transform_2, window_bounds = array<i64: 1, 512>}, {pipeline_mode = #tpu.pipeline_mode<synchronous>, transform_indices = @transform_3, window_bounds = array<i64: 512, 128>}, {pipeline_mode = #tpu.pipeline_mode<synchronous>, transform_indices = @transform_4, window_bounds = array<i64: 1, 128>}, {transform_indices = @transform_5, window_bounds = array<i64: 8, 128>}]} {
    %c0 = arith.constant 0 : index
    %c0_0 = arith.constant 0 : index
    %0 = vector.load %arg1[%c0, %c0_0] : memref<8x256xf32, #tpu.memory_space<vmem>>, vector<8x256xf32>
    %1 = arith.truncf %0 : vector<8x256xf32> to vector<8x256xbf16>
    %c0_1 = arith.constant 0 : index
    %c0_2 = arith.constant 0 : index
    %2 = vector.load %arg2[%c0_1, %c0_2] : memref<256x512xbf16, #tpu.memory_space<vmem>>, vector<256x512xbf16>
    %cst = arith.constant dense<0.000000e+00> : vector<8x512xf32>
    %3 = tpu.matmul %1, %2, %cst {dimension_numbers = #tpu.dot_dimension_numbers<[1], [0], [0], [1], [0, 0, 1, 1], [], []>} : vector<8x256xbf16>, vector<256x512xbf16>, vector<8x512xf32> -> vector<8x512xf32>
    %c0_3 = arith.constant 0 : index
    %c0_4 = arith.constant 0 : index
    %4 = vector.load %arg3[%c0_3, %c0_4] : memref<1x512xf32, #tpu.memory_space<vmem>>, vector<1x512xf32>
    %5 = vector.broadcast %4 : vector<1x512xf32> to vector<8x512xf32>
    %6 = arith.addf %3, %5 : vector<8x512xf32>
    %cst_5 = arith.constant 0.000000e+00 : f32
    %7 = vector.broadcast %cst_5 : f32 to vector<8x512xf32>
    %8 = arith.maximumf %6, %7 : vector<8x512xf32>
    %9 = arith.truncf %8 : vector<8x512xf32> to vector<8x512xbf16>
    %c0_6 = arith.constant 0 : index
    %c0_7 = arith.constant 0 : index
    %10 = vector.load %arg4[%c0_6, %c0_7] : memref<512x128xbf16, #tpu.memory_space<vmem>>, vector<512x128xbf16>
    %cst_8 = arith.constant dense<0.000000e+00> : vector<8x128xf32>
    %11 = tpu.matmul %9, %10, %cst_8 {dimension_numbers = #tpu.dot_dimension_numbers<[1], [0], [0], [1], [0, 0, 1, 1], [], []>} : vector<8x512xbf16>, vector<512x128xbf16>, vector<8x128xf32> -> vector<8x128xf32>
    %c0_9 = arith.constant 0 : index
    %c0_10 = arith.constant 0 : index
    %12 = vector.load %arg5[%c0_9, %c0_10] : memref<1x128xf32, #tpu.memory_space<vmem>>, vector<1x128xf32>
    %13 = vector.broadcast %12 : vector<1x128xf32> to vector<8x128xf32>
    %14 = arith.addf %11, %13 : vector<8x128xf32>
    %c0_11 = arith.constant 0 : index
    %c0_12 = arith.constant 0 : index
    %15 = vector.load %arg6[%c0_11, %c0_12] : memref<8x128xf32, #tpu.memory_space<vmem>>, vector<8x128xf32>
    tpu.vector_store %arg6[%c0_11, %c0_12], %14 {strides = array<i32>} : memref<8x128xf32, #tpu.memory_space<vmem>>, vector<8x128xf32>,
    return
  }
  func.func @transform_0(%arg0: i32) -> (i32, i32) {
    %c0_i32 = arith.constant 0 : i32
    %c0_i32_0 = arith.constant 0 : i32
    return %arg0, %c0_i32 : i32, i32
  }
  func.func @transform_1(%arg0: i32) -> (i32, i32) {
    %c0_i32 = arith.constant 0 : i32
    %c0_i32_0 = arith.constant 0 : i32
    %c0_i32_1 = arith.constant 0 : i32
    return %c0_i32, %c0_i32_0 : i32, i32
  }
  func.func @transform_2(%arg0: i32) -> (i32, i32) {
    %c0_i32 = arith.constant 0 : i32
    %c0_i32_0 = arith.constant 0 : i32
    %c0_i32_1 = arith.constant 0 : i32
    return %c0_i32, %c0_i32_0 : i32, i32
  }
  func.func @transform_3(%arg0: i32) -> (i32, i32) {
    %c0_i32 = arith.constant 0 : i32
    %c0_i32_0 = arith.constant 0 : i32
    %c0_i32_1 = arith.constant 0 : i32
    return %c0_i32, %c0_i32_0 : i32, i32
  }
  func.func @transform_4(%arg0: i32) -> (i32, i32) {
    %c0_i32 = arith.constant 0 : i32
    %c0_i32_0 = arith.constant 0 : i32
    %c0_i32_1 = arith.constant 0 : i32
    return %c0_i32, %c0_i32_0 : i32, i32
  }
  func.func @transform_5(%arg0: i32) -> (i32, i32) {
    %c0_i32 = arith.constant 0 : i32
    %c0_i32_0 = arith.constant 0 : i32
    return %arg0, %c0_i32 : i32, i32
  }
}

</mosaic_0001>

<llo_original>
// kernel: extended_classifier_prepared.1
$region0: #{extended_classifier_prepared.1}
  #allocation0 [shape = 'u32[]', space=smem, size = 0x4, offset = 0x4, fixed_abs, tag = 'smem constant byte address 0x4 - core index']
  #allocation1 [shape = 'u32[72,128]{1,0:T(1,128)}', space=vmem, size = 0x9000, scoped, tag = 'internal scratch']
  %s0 = inlined_call_operand.hbm [shape: f32[8,256], index: 0, kind: input, shape index: {}]
  %s1 = inlined_call_operand.hbm [shape: bf16[256,512], index: 1, kind: input, shape index: {}]
  %s2 = inlined_call_operand.hbm [shape: f32[1,512], index: 2, kind: input, shape index: {}]
  %s3 = inlined_call_operand.hbm [shape: bf16[512,128], index: 3, kind: input, shape index: {}]
  %s4 = inlined_call_operand.vmem [shape: f32[1,128], index: 4, kind: input, shape index: {}]
  %s5 = inlined_call_operand.hbm [shape: f32[8,128], index: 5, kind: output, shape index: {}]
  %s6 = sld [smem:[#allocation0]]
  $region46: #{extended_classifier_prepared.1} parent=0
    _
  %s8 = ssub.s32 1, %s6
  %s9 = scalar_select 0, %s8, %s6
  $region1: #{extended_classifier_prepared.1} parent=0
    #allocation2 [shape = 'u8[8192]{0}', space=vmem, size = 0x2000, scoped, tag = 'input window, operand 0, single buffered']
    #allocation3 [shape = 's32[1]{0}', space=sflag, size = 0x4, scoped, tag = 'scoped memory for extended_classifier_prepared.1']
    #allocation4 [shape = 's32[1]{0}', space=sflag, size = 0x4, scoped, tag = 'scoped memory for extended_classifier_prepared.1']
    #allocation5 [shape = 'u8[262144]{0}', space=vmem, size = 0x40000, scoped, tag = 'input window, operand 1, single buffered']
    #allocation6 [shape = 's32[1]{0}', space=sflag, size = 0x4, scoped, tag = 'scoped memory for extended_classifier_prepared.1']
    #allocation7 [shape = 'u8[2048]{0}', space=vmem, size = 0x800, scoped, tag = 'input window, operand 2, single buffered']
    #allocation8 [shape = 'u8[131072]{0}', space=vmem, size = 0x20000, scoped, tag = 'input window, operand 3, single buffered']
    #allocation9 [shape = 's32[1]{0}', space=sflag, size = 0x4, scoped, tag = 'scoped memory for extended_classifier_prepared.1']
    #allocation10 [shape = 'u8[4096]{0}', space=vmem, size = 0x1000, scoped, tag = 'output window, operand 0, single buffered']
    %10 = vsyncpa [#allocation3], 0
    %11 = vsyncpa [#allocation6], 0
    %12 = vsyncpa [#allocation9], 0
    %13 = vsyncpa [#allocation4], 0
    // Predicated region
    $region2: #{extended_classifier_prepared.1} parent=1 // pred_check
      _
    $region3: #{extended_classifier_prepared.1} parent=1 // pred_check_branch
      %15 = sbr.rel (0) target = $region5
    $region4: #{extended_classifier_prepared.1} parent=1 // pred_region
      %17 = vsyncadd [#allocation3], 0
      %s19 = sshll.u32 %s0, 4
      %s20 = int_to_ptr.hbm [resolvable:$true] %s19
      %s21 = sshll.u32 [#allocation2], 4
      %s22 = int_to_ptr.vmem [resolvable:$true] %s21
      %24 = dma.hbm_to_vmem [thread:$0]  %s20, 256, %s22, [#allocation3]
    $region5: #{extended_classifier_prepared.1} parent=1 // pred_fallthru
      _
    // Predicated region
    $region6: #{extended_classifier_prepared.1} parent=1 // pred_check
      _
    $region7: #{extended_classifier_prepared.1} parent=1 // pred_check_branch
      %26 = sbr.rel (0) target = $region9
    $region8: #{extended_classifier_prepared.1} parent=1 // pred_region
      %28 = vsyncadd [#allocation6], 0
      %s29 = sshll.u32 %s1, 4
      %s30 = int_to_ptr.hbm [resolvable:$true] %s29
      %s31 = sshll.u32 [#allocation5], 4
      %s32 = int_to_ptr.vmem [resolvable:$true] %s31
      %37 = dma.hbm_to_vmem [thread:$0]  %s30, 8192, %s32, [#allocation6], 256, 256, 16
    $region9: #{extended_classifier_prepared.1} parent=1 // pred_fallthru
      _
    // Predicated region
    $region10: #{extended_classifier_prepared.1} parent=1 // pred_check
      _
    $region11: #{extended_classifier_prepared.1} parent=1 // pred_check_branch
      %39 = sbr.rel (0) target = $region13
    $region12: #{extended_classifier_prepared.1} parent=1 // pred_region
      %41 = vsyncadd [#allocation6], 0
      %s43 = sshll.u32 %s2, 4
      %s44 = int_to_ptr.hbm [resolvable:$true] %s43
      %s45 = sshll.u32 [#allocation7], 4
      %s46 = int_to_ptr.vmem [resolvable:$true] %s45
      %48 = dma.hbm_to_vmem [thread:$0]  %s44, 64, %s46, [#allocation6]
    $region13: #{extended_classifier_prepared.1} parent=1 // pred_fallthru
      _
    // Predicated region
    $region14: #{extended_classifier_prepared.1} parent=1 // pred_check
      _
    $region15: #{extended_classifier_prepared.1} parent=1 // pred_check_branch
      %50 = sbr.rel (0) target = $region17
    $region16: #{extended_classifier_prepared.1} parent=1 // pred_region
      %52 = vsyncadd [#allocation9], 0
      %s53 = sshll.u32 %s3, 4
      %s54 = int_to_ptr.hbm [resolvable:$true] %s53
      %s55 = sshll.u32 [#allocation8], 4
      %s56 = int_to_ptr.vmem [resolvable:$true] %s55
      %61 = dma.hbm_to_vmem [thread:$0]  %s54, 4096, %s56, [#allocation9], 64, 64, 4
    $region17: #{extended_classifier_prepared.1} parent=1 // pred_fallthru
      _
    // Predicated region
    $region18: #{extended_classifier_prepared.1} parent=1 // pred_check
      _
    $region19: #{extended_classifier_prepared.1} parent=1 // pred_check_branch
      %63 = sbr.rel (0) target = $region21
    $region20: #{extended_classifier_prepared.1} parent=1 // pred_region
      _
    $region21: #{extended_classifier_prepared.1} parent=1 // pred_fallthru
      _
    // Predicated region
    $region22: #{extended_classifier_prepared.1} parent=1 // pred_check
      _
    $region23: #{extended_classifier_prepared.1} parent=1 // pred_check_branch
      %65 = sbr.rel (0) target = $region25
    $region24: #{extended_classifier_prepared.1} parent=1 // pred_region
      %67 = dma.done [#allocation3], 256
    $region25: #{extended_classifier_prepared.1} parent=1 // pred_fallthru
      _
    // Predicated region
    $region26: #{extended_classifier_prepared.1} parent=1 // pred_check
      _
    $region27: #{extended_classifier_prepared.1} parent=1 // pred_check_branch
      %69 = sbr.rel (0) target = $region29
    $region28: #{extended_classifier_prepared.1} parent=1 // pred_region
      %71 = dma.done [#allocation6], 8192
    $region29: #{extended_classifier_prepared.1} parent=1 // pred_fallthru
      _
    // Predicated region
    $region30: #{extended_classifier_prepared.1} parent=1 // pred_check
      _
    $region31: #{extended_classifier_prepared.1} parent=1 // pred_check_branch
      %73 = sbr.rel (0) target = $region33
    $region32: #{extended_classifier_prepared.1} parent=1 // pred_region
      %75 = dma.done [#allocation6], 64
    $region33: #{extended_classifier_prepared.1} parent=1 // pred_fallthru
      _
    // Predicated region
    $region34: #{extended_classifier_prepared.1} parent=1 // pred_check
      _
    $region35: #{extended_classifier_prepared.1} parent=1 // pred_check_branch
      %77 = sbr.rel (0) target = $region37
    $region36: #{extended_classifier_prepared.1} parent=1 // pred_region
      %79 = dma.done [#allocation9], 4096
    $region37: #{extended_classifier_prepared.1} parent=1 // pred_fallthru
      _
    %v80 = vld [vmem:[#allocation2] sm:$0xff]
    %v81 = vld [vmem:[#allocation2 + $0x8] sm:$0xff]
    %v82 = vpack.c.bf16 %v80, %v80
    %v83 = vpack.c.bf16 %v81, %v81
    %v84 = vld [vmem:[#allocation5] sm:$0xff]
    %v85 = vld [vmem:[#allocation5 + $0x8] sm:$0xff]
    %v86 = vld [vmem:[#allocation5 + $0x10] sm:$0xff]
    %v87 = vld [vmem:[#allocation5 + $0x18] sm:$0xff]
    %v88 = vld [vmem:[#allocation5 + $0x20] sm:$0xff]
    %v89 = vld [vmem:[#allocation5 + $0x28] sm:$0xff]
    %v90 = vld [vmem:[#allocation5 + $0x30] sm:$0xff]
    %v91 = vld [vmem:[#allocation5 + $0x38] sm:$0xff]
    %v92 = vld [vmem:[#allocation5 + $0x40] sm:$0xff]
    %v93 = vld [vmem:[#allocation5 + $0x48] sm:$0xff]
    %v94 = vld [vmem:[#allocation5 + $0x50] sm:$0xff]
    %v95 = vld [vmem:[#allocation5 + $0x58] sm:$0xff]
    %v96 = vld [vmem:[#allocation5 + $0x60] sm:$0xff]
    %v97 = vld [vmem:[#allocation5 + $0x68] sm:$0xff]
    %v98 = vld [vmem:[#allocation5 + $0x70] sm:$0xff]
    %v99 = vld [vmem:[#allocation5 + $0x78] sm:$0xff]
    %v100 = vld [vmem:[#allocation5 + $0x80] sm:$0xff]
    %v101 = vld [vmem:[#allocation5 + $0x88] sm:$0xff]
    %v102 = vld [vmem:[#allocation5 + $0x90] sm:$0xff]
    %v103 = vld [vmem:[#allocation5 + $0x98] sm:$0xff]
    %v104 = vld [vmem:[#allocation5 + $0xa0] sm:$0xff]
    %v105 = vld [vmem:[#allocation5 + $0xa8] sm:$0xff]
    %v106 = vld [vmem:[#allocation5 + $0xb0] sm:$0xff]
    %v107 = vld [vmem:[#allocation5 + $0xb8] sm:$0xff]
    %v108 = vld [vmem:[#allocation5 + $0xc0] sm:$0xff]
    %v109 = vld [vmem:[#allocation5 + $0xc8] sm:$0xff]
    %v110 = vld [vmem:[#allocation5 + $0xd0] sm:$0xff]
    %v111 = vld [vmem:[#allocation5 + $0xd8] sm:$0xff]
    %v112 = vld [vmem:[#allocation5 + $0xe0] sm:$0xff]
    %v113 = vld [vmem:[#allocation5 + $0xe8] sm:$0xff]
    %v114 = vld [vmem:[#allocation5 + $0xf0] sm:$0xff]
    %v115 = vld [vmem:[#allocation5 + $0xf8] sm:$0xff]
    %v116 = vld [vmem:[#allocation5 + $0x100] sm:$0xff]
    %v117 = vld [vmem:[#allocation5 + $0x108] sm:$0xff]
    %v118 = vld [vmem:[#allocation5 + $0x110] sm:$0xff]
    %v119 = vld [vmem:[#allocation5 + $0x118] sm:$0xff]
    %v120 = vld [vmem:[#allocation5 + $0x120] sm:$0xff]
    %v121 = vld [vmem:[#allocation5 + $0x128] sm:$0xff]
    %v122 = vld [vmem:[#allocation5 + $0x130] sm:$0xff]
    %v123 = vld [vmem:[#allocation5 + $0x138] sm:$0xff]
    %v124 = vld [vmem:[#allocation5 + $0x140] sm:$0xff]
    %v125 = vld [vmem:[#allocation5 + $0x148] sm:$0xff]
    %v126 = vld [vmem:[#allocation5 + $0x150] sm:$0xff]
    %v127 = vld [vmem:[#allocation5 + $0x158] sm:$0xff]
    %v128 = vld [vmem:[#allocation5 + $0x160] sm:$0xff]
    %v129 = vld [vmem:[#allocation5 + $0x168] sm:$0xff]
    %v130 = vld [vmem:[#allocation5 + $0x170] sm:$0xff]
    %v131 = vld [vmem:[#allocation5 + $0x178] sm:$0xff]
    %v132 = vld [vmem:[#allocation5 + $0x180] sm:$0xff]
    %v133 = vld [vmem:[#allocation5 + $0x188] sm:$0xff]
    %v134 = vld [vmem:[#allocation5 + $0x190] sm:$0xff]
    %v135 = vld [vmem:[#allocation5 + $0x198] sm:$0xff]
    %v136 = vld [vmem:[#allocation5 + $0x1a0] sm:$0xff]
    %v137 = vld [vmem:[#allocation5 + $0x1a8] sm:$0xff]
    %v138 = vld [vmem:[#allocation5 + $0x1b0] sm:$0xff]
    %v139 = vld [vmem:[#allocation5 + $0x1b8] sm:$0xff]
    %v140 = vld [vmem:[#allocation5 + $0x1c0] sm:$0xff]
    %v141 = vld [vmem:[#allocation5 + $0x1c8] sm:$0xff]
    %v142 = vld [vmem:[#allocation5 + $0x1d0] sm:$0xff]
    %v143 = vld [vmem:[#allocation5 + $0x1d8] sm:$0xff]
    %v144 = vld [vmem:[#allocation5 + $0x1e0] sm:$0xff]
    %v145 = vld [vmem:[#allocation5 + $0x1e8] sm:$0xff]
    %v146 = vld [vmem:[#allocation5 + $0x1f0] sm:$0xff]
    %v147 = vld [vmem:[#allocation5 + $0x1f8] sm:$0xff]
    %v148 = vld [vmem:[#allocation7] sm:$0xf]
    %v150 = vperm.slane %v148, 0
    %v151 = vperm.slane %v148, 1
    %v152 = vperm.slane %v148, 2
    %v153 = vperm.slane %v148, 3
    %v222 = vunpack.c.l.b16 %v84
    %v223 = vunpack.c.h.b16 %v84
    %v224 = vunpack.c.l.b16 %v85
    %v225 = vunpack.c.h.b16 %v85
    %v226 = vunpack.c.l.b16 %v86
    %v227 = vunpack.c.h.b16 %v86
    %v228 = vunpack.c.l.b16 %v87
    %v229 = vunpack.c.h.b16 %v87
    %v230 = vunpack.c.l.b16 %v88
    %v231 = vunpack.c.h.b16 %v88
    %v232 = vunpack.c.l.b16 %v89
    %v233 = vunpack.c.h.b16 %v89
    %v234 = vunpack.c.l.b16 %v90
    %v235 = vunpack.c.h.b16 %v90
    %v236 = vunpack.c.l.b16 %v91
    %v237 = vunpack.c.h.b16 %v91
    %v238 = vunpack.c.l.b16 %v92
    %v239 = vunpack.c.h.b16 %v92
    %v240 = vunpack.c.l.b16 %v93
    %v241 = vunpack.c.h.b16 %v93
    %v242 = vunpack.c.l.b16 %v94
    %v243 = vunpack.c.h.b16 %v94
    %v244 = vunpack.c.l.b16 %v95
    %v245 = vunpack.c.h.b16 %v95
    %v246 = vunpack.c.l.b16 %v96
    %v247 = vunpack.c.h.b16 %v96
    %v248 = vunpack.c.l.b16 %v97
    %v249 = vunpack.c.h.b16 %v97
    %v250 = vunpack.c.l.b16 %v98
    %v251 = vunpack.c.h.b16 %v98
    %v252 = vunpack.c.l.b16 %v99
    %v253 = vunpack.c.h.b16 %v99
    %v254 = vunpack.c.l.b16 %v100
    %v255 = vunpack.c.h.b16 %v100
    %v256 = vunpack.c.l.b16 %v101
    %v257 = vunpack.c.h.b16 %v101
    %v258 = vunpack.c.l.b16 %v102
    %v259 = vunpack.c.h.b16 %v102
    %v260 = vunpack.c.l.b16 %v103
    %v261 = vunpack.c.h.b16 %v103
    %v262 = vunpack.c.l.b16 %v104
    %v263 = vunpack.c.h.b16 %v104
    %v264 = vunpack.c.l.b16 %v105
    %v265 = vunpack.c.h.b16 %v105
    %v266 = vunpack.c.l.b16 %v106
    %v267 = vunpack.c.h.b16 %v106
    %v268 = vunpack.c.l.b16 %v107
    %v269 = vunpack.c.h.b16 %v107
    %v270 = vunpack.c.l.b16 %v108
    %v271 = vunpack.c.h.b16 %v108
    %v272 = vunpack.c.l.b16 %v109
    %v273 = vunpack.c.h.b16 %v109
    %v274 = vunpack.c.l.b16 %v110
    %v275 = vunpack.c.h.b16 %v110
    %v276 = vunpack.c.l.b16 %v111
    %v277 = vunpack.c.h.b16 %v111
    %v278 = vunpack.c.l.b16 %v112
    %v279 = vunpack.c.h.b16 %v112
    %v280 = vunpack.c.l.b16 %v113
    %v281 = vunpack.c.h.b16 %v113
    %v282 = vunpack.c.l.b16 %v114
    %v283 = vunpack.c.h.b16 %v114
    %v284 = vunpack.c.l.b16 %v115
    %v285 = vunpack.c.h.b16 %v115
    %v286 = vunpack.c.l.b16 %v116
    %v287 = vunpack.c.h.b16 %v116
    %v288 = vunpack.c.l.b16 %v117
    %v289 = vunpack.c.h.b16 %v117
    %v290 = vunpack.c.l.b16 %v118
    %v291 = vunpack.c.h.b16 %v118
    %v292 = vunpack.c.l.b16 %v119
    %v293 = vunpack.c.h.b16 %v119
    %v294 = vunpack.c.l.b16 %v120
    %v295 = vunpack.c.h.b16 %v120
    %v296 = vunpack.c.l.b16 %v121
    %v297 = vunpack.c.h.b16 %v121
    %v298 = vunpack.c.l.b16 %v122
    %v299 = vunpack.c.h.b16 %v122
    %v300 = vunpack.c.l.b16 %v123
    %v301 = vunpack.c.h.b16 %v123
    %v302 = vunpack.c.l.b16 %v124
    %v303 = vunpack.c.h.b16 %v124
    %v304 = vunpack.c.l.b16 %v125
    %v305 = vunpack.c.h.b16 %v125
    %v306 = vunpack.c.l.b16 %v126
    %v307 = vunpack.c.h.b16 %v126
    %v308 = vunpack.c.l.b16 %v127
    %v309 = vunpack.c.h.b16 %v127
    %v310 = vunpack.c.l.b16 %v128
    %v311 = vunpack.c.h.b16 %v128
    %v312 = vunpack.c.l.b16 %v129
    %v313 = vunpack.c.h.b16 %v129
    %v314 = vunpack.c.l.b16 %v130
    %v315 = vunpack.c.h.b16 %v130
    %v316 = vunpack.c.l.b16 %v131
    %v317 = vunpack.c.h.b16 %v131
    %v318 = vunpack.c.l.b16 %v132
    %v319 = vunpack.c.h.b16 %v132
    %v320 = vunpack.c.l.b16 %v133
    %v321 = vunpack.c.h.b16 %v133
    %v322 = vunpack.c.l.b16 %v134
    %v323 = vunpack.c.h.b16 %v134
    %v324 = vunpack.c.l.b16 %v135
    %v325 = vunpack.c.h.b16 %v135
    %v326 = vunpack.c.l.b16 %v136
    %v327 = vunpack.c.h.b16 %v136
    %v328 = vunpack.c.l.b16 %v137
    %v329 = vunpack.c.h.b16 %v137
    %v330 = vunpack.c.l.b16 %v138
    %v331 = vunpack.c.h.b16 %v138
    %v332 = vunpack.c.l.b16 %v139
    %v333 = vunpack.c.h.b16 %v139
    %v334 = vunpack.c.l.b16 %v140
    %v335 = vunpack.c.h.b16 %v140
    %v336 = vunpack.c.l.b16 %v141
    %v337 = vunpack.c.h.b16 %v141
    %v338 = vunpack.c.l.b16 %v142
    %v339 = vunpack.c.h.b16 %v142
    %v340 = vunpack.c.l.b16 %v143
    %v341 = vunpack.c.h.b16 %v143
    %v342 = vunpack.c.l.b16 %v144
    %v343 = vunpack.c.h.b16 %v144
    %v344 = vunpack.c.l.b16 %v145
    %v345 = vunpack.c.h.b16 %v145
    %v346 = vunpack.c.l.b16 %v146
    %v347 = vunpack.c.h.b16 %v146
    %v348 = vunpack.c.l.b16 %v147
    %v349 = vunpack.c.h.b16 %v147
    %v350 = vpack.c.b16 %v226, %v222
    %v351 = vpack.c.b16 %v227, %v223
    %v352 = vpack.c.b16 %v228, %v224
    %v353 = vpack.c.b16 %v229, %v225
    %v354 = vpack.c.b16 %v234, %v230
    %v355 = vpack.c.b16 %v235, %v231
    %v356 = vpack.c.b16 %v236, %v232
    %v357 = vpack.c.b16 %v237, %v233
    %v358 = vpack.c.b16 %v242, %v238
    %v359 = vpack.c.b16 %v243, %v239
    %v360 = vpack.c.b16 %v244, %v240
    %v361 = vpack.c.b16 %v245, %v241
    %v362 = vpack.c.b16 %v250, %v246
    %v363 = vpack.c.b16 %v251, %v247
    %v364 = vpack.c.b16 %v252, %v248
    %v365 = vpack.c.b16 %v253, %v249
    %v366 = vpack.c.b16 %v258, %v254
    %v367 = vpack.c.b16 %v259, %v255
    %v368 = vpack.c.b16 %v260, %v256
    %v369 = vpack.c.b16 %v261, %v257
    %v370 = vpack.c.b16 %v266, %v262
    %v371 = vpack.c.b16 %v267, %v263
    %v372 = vpack.c.b16 %v268, %v264
    %v373 = vpack.c.b16 %v269, %v265
    %v374 = vpack.c.b16 %v274, %v270
    %v375 = vpack.c.b16 %v275, %v271
    %v376 = vpack.c.b16 %v276, %v272
    %v377 = vpack.c.b16 %v277, %v273
    %v378 = vpack.c.b16 %v282, %v278
    %v379 = vpack.c.b16 %v283, %v279
    %v380 = vpack.c.b16 %v284, %v280
    %v381 = vpack.c.b16 %v285, %v281
    %v382 = vpack.c.b16 %v290, %v286
    %v383 = vpack.c.b16 %v291, %v287
    %v384 = vpack.c.b16 %v292, %v288
    %v385 = vpack.c.b16 %v293, %v289
    %v386 = vpack.c.b16 %v298, %v294
    %v387 = vpack.c.b16 %v299, %v295
    %v388 = vpack.c.b16 %v300, %v296
    %v389 = vpack.c.b16 %v301, %v297
    %v390 = vpack.c.b16 %v306, %v302
    %v391 = vpack.c.b16 %v307, %v303
    %v392 = vpack.c.b16 %v308, %v304
    %v393 = vpack.c.b16 %v309, %v305
    %v394 = vpack.c.b16 %v314, %v310
    %v395 = vpack.c.b16 %v315, %v311
    %v396 = vpack.c.b16 %v316, %v312
    %v397 = vpack.c.b16 %v317, %v313
    %v398 = vpack.c.b16 %v322, %v318
    %v399 = vpack.c.b16 %v323, %v319
    %v400 = vpack.c.b16 %v324, %v320
    %v401 = vpack.c.b16 %v325, %v321
    %v402 = vpack.c.b16 %v330, %v326
    %v403 = vpack.c.b16 %v331, %v327
    %v404 = vpack.c.b16 %v332, %v328
    %v405 = vpack.c.b16 %v333, %v329
    %v406 = vpack.c.b16 %v338, %v334
    %v407 = vpack.c.b16 %v339, %v335
    %v408 = vpack.c.b16 %v340, %v336
    %v409 = vpack.c.b16 %v341, %v337
    %v410 = vpack.c.b16 %v346, %v342
    %v411 = vpack.c.b16 %v347, %v343
    %v412 = vpack.c.b16 %v348, %v344
    %v413 = vpack.c.b16 %v349, %v345
    %478 = vmatpush.bf16.msra.mxu0 %v378
    %479 = vmatpush.bf16.msra.mxu0 %v374
    %480 = vmatpush.bf16.msra.mxu0 %v370
    %481 = vmatpush.bf16.msra.mxu0 %v366
    %482 = vmatpush.bf16.msra.mxu0 %v362
    %483 = vmatpush.bf16.msra.mxu0 %v358
    %484 = vmatpush.bf16.msra.mxu0 %v354
    %485 = vmatpush.bf16.msra.mxu0 %v350
    %486 = vmatmul.bf16.gmra.mxu0 %v82
    %v487 = vpop.f32.mrf.mxu0
    %v488 = vadd.f32 %v150, %v487
    %v489 = vpop.f32.mrf.mxu0
    %490 = vdwg.mxu0
    %491 = vmatpush.bf16.msra.mxu0 %v410
    %492 = vmatpush.bf16.msra.mxu0 %v406
    %493 = vmatpush.bf16.msra.mxu0 %v402
    %494 = vmatpush.bf16.msra.mxu0 %v398
    %495 = vmatpush.bf16.msra.mxu0 %v394
    %496 = vmatpush.bf16.msra.mxu0 %v390
    %497 = vmatpush.bf16.msra.mxu0 %v386
    %498 = vmatpush.bf16.msra.mxu0 %v382
    %499 = vmatmul.bf16.gmra.mxu0 %v83
    %v500 = vpop.f32.mrf.mxu0
    %v501 = vadd.f32 %v488, %v500
    %v502 = vpop.f32.mrf.mxu0
    %503 = vdwg.mxu0
    %504 = vmatpush.bf16.msra.mxu0 %v379
    %505 = vmatpush.bf16.msra.mxu0 %v375
    %506 = vmatpush.bf16.msra.mxu0 %v371
    %507 = vmatpush.bf16.msra.mxu0 %v367
    %508 = vmatpush.bf16.msra.mxu0 %v363
    %509 = vmatpush.bf16.msra.mxu0 %v359
    %510 = vmatpush.bf16.msra.mxu0 %v355
    %511 = vmatpush.bf16.msra.mxu0 %v351
    %512 = vmatmul.bf16.gmra.mxu0 %v82
    %v513 = vpop.f32.mrf.mxu0
    %v514 = vadd.f32 %v151, %v513
    %v515 = vpop.f32.mrf.mxu0
    %516 = vdwg.mxu0
    %517 = vmatpush.bf16.msra.mxu0 %v411
    %518 = vmatpush.bf16.msra.mxu0 %v407
    %519 = vmatpush.bf16.msra.mxu0 %v403
    %520 = vmatpush.bf16.msra.mxu0 %v399
    %521 = vmatpush.bf16.msra.mxu0 %v395
    %522 = vmatpush.bf16.msra.mxu0 %v391
    %523 = vmatpush.bf16.msra.mxu0 %v387
    %524 = vmatpush.bf16.msra.mxu0 %v383
    %525 = vmatmul.bf16.gmra.mxu0 %v83
    %v526 = vpop.f32.mrf.mxu0
    %v527 = vadd.f32 %v514, %v526
    %v528 = vpop.f32.mrf.mxu0
    %529 = vdwg.mxu0
    %530 = vmatpush.bf16.msra.mxu0 %v380
    %531 = vmatpush.bf16.msra.mxu0 %v376
    %532 = vmatpush.bf16.msra.mxu0 %v372
    %533 = vmatpush.bf16.msra.mxu0 %v368
    %534 = vmatpush.bf16.msra.mxu0 %v364
    %535 = vmatpush.bf16.msra.mxu0 %v360
    %536 = vmatpush.bf16.msra.mxu0 %v356
    %537 = vmatpush.bf16.msra.mxu0 %v352
    %538 = vmatmul.bf16.gmra.mxu0 %v82
    %v539 = vpop.f32.mrf.mxu0
    %v540 = vadd.f32 %v152, %v539
    %v541 = vpop.f32.mrf.mxu0
    %542 = vdwg.mxu0
    %543 = vmatpush.bf16.msra.mxu0 %v412
    %544 = vmatpush.bf16.msra.mxu0 %v408
    %545 = vmatpush.bf16.msra.mxu0 %v404
    %546 = vmatpush.bf16.msra.mxu0 %v400
    %547 = vmatpush.bf16.msra.mxu0 %v396
    %548 = vmatpush.bf16.msra.mxu0 %v392
    %549 = vmatpush.bf16.msra.mxu0 %v388
    %550 = vmatpush.bf16.msra.mxu0 %v384
    %551 = vmatmul.bf16.gmra.mxu0 %v83
    %v552 = vpop.f32.mrf.mxu0
    %v553 = vadd.f32 %v540, %v552
    %v554 = vpop.f32.mrf.mxu0
    %555 = vdwg.mxu0
    %556 = vmatpush.bf16.msra.mxu0 %v381
    %557 = vmatpush.bf16.msra.mxu0 %v377
    %558 = vmatpush.bf16.msra.mxu0 %v373
    %559 = vmatpush.bf16.msra.mxu0 %v369
    %560 = vmatpush.bf16.msra.mxu0 %v365
    %561 = vmatpush.bf16.msra.mxu0 %v361
    %562 = vmatpush.bf16.msra.mxu0 %v357
    %563 = vmatpush.bf16.msra.mxu0 %v353
    %564 = vmatmul.bf16.gmra.mxu0 %v82
    %v565 = vpop.f32.mrf.mxu0
    %v566 = vadd.f32 %v153, %v565
    %v567 = vpop.f32.mrf.mxu0
    %568 = vdwg.mxu0
    %569 = vmatpush.bf16.msra.mxu0 %v413
    %570 = vmatpush.bf16.msra.mxu0 %v409
    %571 = vmatpush.bf16.msra.mxu0 %v405
    %572 = vmatpush.bf16.msra.mxu0 %v401
    %573 = vmatpush.bf16.msra.mxu0 %v397
    %574 = vmatpush.bf16.msra.mxu0 %v393
    %575 = vmatpush.bf16.msra.mxu0 %v389
    %576 = vmatpush.bf16.msra.mxu0 %v385
    %577 = vmatmul.bf16.gmra.mxu0 %v83
    %v578 = vpop.f32.mrf.mxu0
    %v579 = vadd.f32 %v566, %v578
    %v580 = vpop.f32.mrf.mxu0
    %581 = vdwg.mxu0
    %v582 = vmax.f32 %v501, 0.0
    %v583 = vmax.f32 %v527, 0.0
    %v584 = vmax.f32 %v553, 0.0
    %v585 = vmax.f32 %v579, 0.0
    %v586 = vpack.c.bf16 %v582, %v582
    %v587 = vpack.c.bf16 %v583, %v583
    %v588 = vpack.c.bf16 %v584, %v584
    %v589 = vpack.c.bf16 %v585, %v585
    %v590 = vld [vmem:[#allocation8] sm:$0xf]
    %v591 = vld [vmem:[#allocation8 + $0x4] sm:$0xf]
    %v592 = vld [vmem:[#allocation8 + $0x8] sm:$0xf]
    %v593 = vld [vmem:[#allocation8 + $0xc] sm:$0xf]
    %v594 = vld [vmem:[#allocation8 + $0x10] sm:$0xf]
    %v595 = vld [vmem:[#allocation8 + $0x14] sm:$0xf]
    %v596 = vld [vmem:[#allocation8 + $0x18] sm:$0xf]
    %v597 = vld [vmem:[#allocation8 + $0x1c] sm:$0xf]
    %v598 = vld [vmem:[#allocation8 + $0x20] sm:$0xf]
    %v599 = vld [vmem:[#allocation8 + $0x24] sm:$0xf]
    %v600 = vld [vmem:[#allocation8 + $0x28] sm:$0xf]
    %v601 = vld [vmem:[#allocation8 + $0x2c] sm:$0xf]
    %v602 = vld [vmem:[#allocation8 + $0x30] sm:$0xf]
    %v603 = vld [vmem:[#allocation8 + $0x34] sm:$0xf]
    %v604 = vld [vmem:[#allocation8 + $0x38] sm:$0xf]
    %v605 = vld [vmem:[#allocation8 + $0x3c] sm:$0xf]
    %v606 = vld [vmem:[#allocation8 + $0x40] sm:$0xf]
    %v607 = vld [vmem:[#allocation8 + $0x44] sm:$0xf]
    %v608 = vld [vmem:[#allocation8 + $0x48] sm:$0xf]
    %v609 = vld [vmem:[#allocation8 + $0x4c] sm:$0xf]
    %v610 = vld [vmem:[#allocation8 + $0x50] sm:$0xf]
    %v611 = vld [vmem:[#allocation8 + $0x54] sm:$0xf]
    %v612 = vld [vmem:[#allocation8 + $0x58] sm:$0xf]
    %v613 = vld [vmem:[#allocation8 + $0x5c] sm:$0xf]
    %v614 = vld [vmem:[#allocation8 + $0x60] sm:$0xf]
    %v615 = vld [vmem:[#allocation8 + $0x64] sm:$0xf]
    %v616 = vld [vmem:[#allocation8 + $0x68] sm:$0xf]
    %v617 = vld [vmem:[#allocation8 + $0x6c] sm:$0xf]
    %v618 = vld [vmem:[#allocation8 + $0x70] sm:$0xf]
    %v619 = vld [vmem:[#allocation8 + $0x74] sm:$0xf]
    %v620 = vld [vmem:[#allocation8 + $0x78] sm:$0xf]
    %v621 = vld [vmem:[#allocation8 + $0x7c] sm:$0xf]
    %v622 = vld [vmem:[#allocation8 + $0x80] sm:$0xf]
    %v623 = vld [vmem:[#allocation8 + $0x84] sm:$0xf]
    %v624 = vld [vmem:[#allocation8 + $0x88] sm:$0xf]
    %v625 = vld [vmem:[#allocation8 + $0x8c] sm:$0xf]
    %v626 = vld [vmem:[#allocation8 + $0x90] sm:$0xf]
    %v627 = vld [vmem:[#allocation8 + $0x94] sm:$0xf]
    %v628 = vld [vmem:[#allocation8 + $0x98] sm:$0xf]
    %v629 = vld [vmem:[#allocation8 + $0x9c] sm:$0xf]
    %v630 = vld [vmem:[#allocation8 + $0xa0] sm:$0xf]
    %v631 = vld [vmem:[#allocation8 + $0xa4] sm:$0xf]
    %v632 = vld [vmem:[#allocation8 + $0xa8] sm:$0xf]
    %v633 = vld [vmem:[#allocation8 + $0xac] sm:$0xf]
    %v634 = vld [vmem:[#allocation8 + $0xb0] sm:$0xf]
    %v635 = vld [vmem:[#allocation8 + $0xb4] sm:$0xf]
    %v636 = vld [vmem:[#allocation8 + $0xb8] sm:$0xf]
    %v637 = vld [vmem:[#allocation8 + $0xbc] sm:$0xf]
    %v638 = vld [vmem:[#allocation8 + $0xc0] sm:$0xf]
    %v639 = vld [vmem:[#allocation8 + $0xc4] sm:$0xf]
    %v640 = vld [vmem:[#allocation8 + $0xc8] sm:$0xf]
    %v641 = vld [vmem:[#allocation8 + $0xcc] sm:$0xf]
    %v642 = vld [vmem:[#allocation8 + $0xd0] sm:$0xf]
    %v643 = vld [vmem:[#allocation8 + $0xd4] sm:$0xf]
    %v644 = vld [vmem:[#allocation8 + $0xd8] sm:$0xf]
    %v645 = vld [vmem:[#allocation8 + $0xdc] sm:$0xf]
    %v646 = vld [vmem:[#allocation8 + $0xe0] sm:$0xf]
    %v647 = vld [vmem:[#allocation8 + $0xe4] sm:$0xf]
    %v648 = vld [vmem:[#allocation8 + $0xe8] sm:$0xf]
    %v649 = vld [vmem:[#allocation8 + $0xec] sm:$0xf]
    %v650 = vld [vmem:[#allocation8 + $0xf0] sm:$0xf]
    %v651 = vld [vmem:[#allocation8 + $0xf4] sm:$0xf]
    %v652 = vld [vmem:[#allocation8 + $0xf8] sm:$0xf]
    %v653 = vld [vmem:[#allocation8 + $0xfc] sm:$0xf]
    %v654 = vld [vmem:[%s4] sm:$0x1]
    %v656 = vperm.slane %v654, 0
    %v722 = vunpack.c.l.b16 %v590
    %v723 = vunpack.c.l.b16 %v591
    %v724 = vunpack.c.l.b16 %v592
    %v725 = vunpack.c.l.b16 %v593
    %v726 = vunpack.c.l.b16 %v594
    %v727 = vunpack.c.l.b16 %v595
    %v728 = vunpack.c.l.b16 %v596
    %v729 = vunpack.c.l.b16 %v597
    %v730 = vunpack.c.l.b16 %v598
    %v731 = vunpack.c.l.b16 %v599
    %v732 = vunpack.c.l.b16 %v600
    %v733 = vunpack.c.l.b16 %v601
    %v734 = vunpack.c.l.b16 %v602
    %v735 = vunpack.c.l.b16 %v603
    %v736 = vunpack.c.l.b16 %v604
    %v737 = vunpack.c.l.b16 %v605
    %v738 = vunpack.c.l.b16 %v606
    %v739 = vunpack.c.l.b16 %v607
    %v740 = vunpack.c.l.b16 %v608
    %v741 = vunpack.c.l.b16 %v609
    %v742 = vunpack.c.l.b16 %v610
    %v743 = vunpack.c.l.b16 %v611
    %v744 = vunpack.c.l.b16 %v612
    %v745 = vunpack.c.l.b16 %v613
    %v746 = vunpack.c.l.b16 %v614
    %v747 = vunpack.c.l.b16 %v615
    %v748 = vunpack.c.l.b16 %v616
    %v749 = vunpack.c.l.b16 %v617
    %v750 = vunpack.c.l.b16 %v618
    %v751 = vunpack.c.l.b16 %v619
    %v752 = vunpack.c.l.b16 %v620
    %v753 = vunpack.c.l.b16 %v621
    %v754 = vunpack.c.l.b16 %v622
    %v755 = vunpack.c.l.b16 %v623
    %v756 = vunpack.c.l.b16 %v624
    %v757 = vunpack.c.l.b16 %v625
    %v758 = vunpack.c.l.b16 %v626
    %v759 = vunpack.c.l.b16 %v627
    %v760 = vunpack.c.l.b16 %v628
    %v761 = vunpack.c.l.b16 %v629
    %v762 = vunpack.c.l.b16 %v630
    %v763 = vunpack.c.l.b16 %v631
    %v764 = vunpack.c.l.b16 %v632
    %v765 = vunpack.c.l.b16 %v633
    %v766 = vunpack.c.l.b16 %v634
    %v767 = vunpack.c.l.b16 %v635
    %v768 = vunpack.c.l.b16 %v636
    %v769 = vunpack.c.l.b16 %v637
    %v770 = vunpack.c.l.b16 %v638
    %v771 = vunpack.c.l.b16 %v639
    %v772 = vunpack.c.l.b16 %v640
    %v773 = vunpack.c.l.b16 %v641
    %v774 = vunpack.c.l.b16 %v642
    %v775 = vunpack.c.l.b16 %v643
    %v776 = vunpack.c.l.b16 %v644
    %v777 = vunpack.c.l.b16 %v645
    %v778 = vunpack.c.l.b16 %v646
    %v779 = vunpack.c.l.b16 %v647
    %v780 = vunpack.c.l.b16 %v648
    %v781 = vunpack.c.l.b16 %v649
    %v782 = vunpack.c.l.b16 %v650
    %v783 = vunpack.c.l.b16 %v651
    %v784 = vunpack.c.l.b16 %v652
    %v785 = vunpack.c.l.b16 %v653
    %v786 = vpack.c.b16 %v723, %v722
    %v787 = vpack.c.b16 %v725, %v724
    %v788 = vpack.c.b16 %v727, %v726
    %v789 = vpack.c.b16 %v729, %v728
    %v790 = vpack.c.b16 %v731, %v730
    %v791 = vpack.c.b16 %v733, %v732
    %v792 = vpack.c.b16 %v735, %v734
    %v793 = vpack.c.b16 %v737, %v736
    %v794 = vpack.c.b16 %v739, %v738
    %v795 = vpack.c.b16 %v741, %v740
    %v796 = vpack.c.b16 %v743, %v742
    %v797 = vpack.c.b16 %v745, %v744
    %v798 = vpack.c.b16 %v747, %v746
    %v799 = vpack.c.b16 %v749, %v748
    %v800 = vpack.c.b16 %v751, %v750
    %v801 = vpack.c.b16 %v753, %v752
    %v802 = vpack.c.b16 %v755, %v754
    %v803 = vpack.c.b16 %v757, %v756
    %v804 = vpack.c.b16 %v759, %v758
    %v805 = vpack.c.b16 %v761, %v760
    %v806 = vpack.c.b16 %v763, %v762
    %v807 = vpack.c.b16 %v765, %v764
    %v808 = vpack.c.b16 %v767, %v766
    %v809 = vpack.c.b16 %v769, %v768
    %v810 = vpack.c.b16 %v771, %v770
    %v811 = vpack.c.b16 %v773, %v772
    %v812 = vpack.c.b16 %v775, %v774
    %v813 = vpack.c.b16 %v777, %v776
    %v814 = vpack.c.b16 %v779, %v778
    %v815 = vpack.c.b16 %v781, %v780
    %v816 = vpack.c.b16 %v783, %v782
    %v817 = vpack.c.b16 %v785, %v784
    %850 = vmatpush.bf16.msra.mxu0 %v793
    %851 = vmatpush.bf16.msra.mxu0 %v792
    %852 = vmatpush.bf16.msra.mxu0 %v791
    %853 = vmatpush.bf16.msra.mxu0 %v790
    %854 = vmatpush.bf16.msra.mxu0 %v789
    %855 = vmatpush.bf16.msra.mxu0 %v788
    %856 = vmatpush.bf16.msra.mxu0 %v787
    %857 = vmatpush.bf16.msra.mxu0 %v786
    %858 = vmatmul.bf16.gmra.mxu0 %v586
    %v859 = vpop.f32.mrf.mxu0
    %v860 = vadd.f32 %v656, %v859
    %v861 = vpop.f32.mrf.mxu0
    %862 = vdwg.mxu0
    %863 = vmatpush.bf16.msra.mxu0 %v801
    %864 = vmatpush.bf16.msra.mxu0 %v800
    %865 = vmatpush.bf16.msra.mxu0 %v799
    %866 = vmatpush.bf16.msra.mxu0 %v798
    %867 = vmatpush.bf16.msra.mxu0 %v797
    %868 = vmatpush.bf16.msra.mxu0 %v796
    %869 = vmatpush.bf16.msra.mxu0 %v795
    %870 = vmatpush.bf16.msra.mxu0 %v794
    %871 = vmatmul.bf16.gmra.mxu0 %v587
    %v872 = vpop.f32.mrf.mxu0
    %v873 = vadd.f32 %v860, %v872
    %v874 = vpop.f32.mrf.mxu0
    %875 = vdwg.mxu0
    %876 = vmatpush.bf16.msra.mxu0 %v809
    %877 = vmatpush.bf16.msra.mxu0 %v808
    %878 = vmatpush.bf16.msra.mxu0 %v807
    %879 = vmatpush.bf16.msra.mxu0 %v806
    %880 = vmatpush.bf16.msra.mxu0 %v805
    %881 = vmatpush.bf16.msra.mxu0 %v804
    %882 = vmatpush.bf16.msra.mxu0 %v803
    %883 = vmatpush.bf16.msra.mxu0 %v802
    %884 = vmatmul.bf16.gmra.mxu0 %v588
    %v885 = vpop.f32.mrf.mxu0
    %v886 = vadd.f32 %v873, %v885
    %v887 = vpop.f32.mrf.mxu0
    %888 = vdwg.mxu0
    %889 = vmatpush.bf16.msra.mxu0 %v817
    %890 = vmatpush.bf16.msra.mxu0 %v816
    %891 = vmatpush.bf16.msra.mxu0 %v815
    %892 = vmatpush.bf16.msra.mxu0 %v814
    %893 = vmatpush.bf16.msra.mxu0 %v813
    %894 = vmatpush.bf16.msra.mxu0 %v812
    %895 = vmatpush.bf16.msra.mxu0 %v811
    %896 = vmatpush.bf16.msra.mxu0 %v810
    %897 = vmatmul.bf16.gmra.mxu0 %v589
    %v898 = vpop.f32.mrf.mxu0
    %v899 = vadd.f32 %v886, %v898
    %v900 = vpop.f32.mrf.mxu0
    %901 = vdwg.mxu0
    %902 = vst [vmem:[#allocation10] sm:$0xff] %v899
    // Predicated region
    $region38: #{extended_classifier_prepared.1} parent=1 // pred_check
      _
    $region39: #{extended_classifier_prepared.1} parent=1 // pred_check_branch
      %904 = sbr.rel (0) target = $region41
    $region40: #{extended_classifier_prepared.1} parent=1 // pred_region
      %906 = vsyncadd [#allocation4], 0
      %s908 = sshll.u32 [#allocation10], 4
      %s909 = int_to_ptr.vmem [resolvable:$true] %s908
      %s910 = sshll.u32 %s5, 4
      %s911 = int_to_ptr.hbm [resolvable:$true] %s910
      %913 = dma.vmem_to_hbm [thread:$0]  %s909, 128, %s911, [#allocation4]
    $region41: #{extended_classifier_prepared.1} parent=1 // pred_fallthru
      _
    // Predicated region
    $region42: #{extended_classifier_prepared.1} parent=1 // pred_check
      _
    $region43: #{extended_classifier_prepared.1} parent=1 // pred_check_branch
      %915 = sbr.rel (0) target = $region45
    $region44: #{extended_classifier_prepared.1} parent=1 // pred_region
      %917 = dma.done [#allocation4], 128
    $region45: #{extended_classifier_prepared.1} parent=1 // pred_fallthru
      _
    %918 = vsyncpa [#allocation3], 1
    %919 = vsyncpa [#allocation6], 1
    %920 = vsyncpa [#allocation9], 1
    %921 = vsyncpa [#allocation4], 1

</llo_original>
